<compile_context>
chip_gen: v6e
topology: v6e:2x2x1
jax: 0.10.0
libtpu: 0.0.40
codegen_flags: <defaults>
</compile_context>

<pallas_src>
import functools

import jax
import jax.numpy as jnp
from jax.experimental import pallas as pl
from jax.experimental.pallas import tpu as pltpu

_LANE = 128            # hidden widths (100 / 50 / 30) padded to 128
_OUT_PAD = 8           # 2 real output units padded to 8 sublanes
_N_LAYERS = 4
_MAX_TM = 4096         # max batch-tile rows (fits every gen's scoped VMEM)
_SINGLE_TILE_MAX = 1024  # below this, run the whole batch as one tile


def _round_up(x, m):
    return (x + m - 1) // m * m


def glioma_mlp_kernel(x_ref, w_ref, b0_ref, ot_ref):
    """One batch tile of the whole MLP.

    x_ref : (TM, n_in)        raw (un-padded-lane) input rows
    w_ref : (4, 128, 128)     fc1/fc2/fc3 stored [in, out] (biases folded into
                              row 127 for fc2/fc3); out layer stored [out, in]
                              with its bias folded into column 127
    b0_ref: (1, 128)          fc1 bias, plus 1.0 in lane 127 (constant-1 seed)
    ot_ref: (8, TM)           transposed output block (rows 0..1 are real)
    """
    x = x_ref[...]
    n_in = x.shape[1]

    # fc1: contract only over the n_in real weight rows (K=9, masked on MXU).
    h = jnp.dot(x, w_ref[0, :n_in, :], preferred_element_type=jnp.float32)
    h = jnp.maximum(h + b0_ref[...], 0.0)          # lane 127 becomes 1.0

    # fc2 / fc3: bias folded into weight row 127; w[k][127,127]=1 keeps the
    # constant-1 lane alive through the ReLUs.
    for k in (1, 2):
        h = jnp.maximum(
            jnp.dot(h, w_ref[k], preferred_element_type=jnp.float32), 0.0)

    # Output layer emitted transposed: (8, TM) = W_out_aug @ h^T  (A @ B^T form,
    # contraction over the lane dim of both operands -> lane-dense store).
    out_t = jax.lax.dot_general(
        w_ref[3, :_OUT_PAD, :], h,
        dimension_numbers=(((1,), (1,)), ((), ())),
        preferred_element_type=jnp.float32)
    ot_ref[...] = out_t.astype(ot_ref.dtype)


def prepare_packed_params(params):
    """One-time packing (outside the hot path): transpose / pad / bias-fold."""
    (w1, b1) = params["fc1"]
    (w2, b2) = params["fc2"]
    (w3, b3) = params["fc3"]
    (w4, b4) = params["out"]

    w_packed = jnp.zeros((_N_LAYERS, _LANE, _LANE), jnp.float32)
    b0_aug = jnp.zeros((1, _LANE), jnp.float32)

    # fc1: [in, out]; its bias lives in b0_aug, which also seeds the constant-1
    # lane (lane 127) that carries the folded biases of the later layers.
    d1o, d1i = w1.shape
    w_packed = w_packed.at[0, :d1i, :d1o].set(w1.T.astype(jnp.float32))
    b0_aug = b0_aug.at[0, :d1o].set(b1.astype(jnp.float32))
    b0_aug = b0_aug.at[0, _LANE - 1].set(1.0)

    # fc2 / fc3: [in, out]; bias in row 127; [127,127]=1 propagates the 1-lane.
    for k, (w, b) in ((1, (w2, b2)), (2, (w3, b3))):
        do, di = w.shape
        w_packed = w_packed.at[k, :di, :do].set(w.T.astype(jnp.float32))
        w_packed = w_packed.at[k, _LANE - 1, :do].set(b.astype(jnp.float32))
        w_packed = w_packed.at[k, _LANE - 1, _LANE - 1].set(1.0)

    # out layer: stored [out, in] so the kernel can emit the transposed (8, TM)
    # output block directly; bias folded into column 127 (multiplied by the
    # constant-1 lane of the previous activation).
    do, di = w4.shape
    assert do <= _OUT_PAD
    w_packed = w_packed.at[3, :do, :di].set(w4.astype(jnp.float32))
    w_packed = w_packed.at[3, :do, _LANE - 1].set(b4.astype(jnp.float32))
    return w_packed, b0_aug


def _pick_tiling(rows):
    """Batch-tile size + grid steps. Small batches: one full-array tile.
    Large batches: tile is a multiple of 128, <= 4096 rows, and the grid has
    >= 4 steps so v7x can shard the parallel axis over both TensorCores."""
    if rows <= _SINGLE_TILE_MAX:
        return rows, 1
    n_steps = max(4, pl.cdiv(rows, _MAX_TM))
    tm = min(_MAX_TM, _round_up(pl.cdiv(rows, n_steps), _LANE))
    return tm, pl.cdiv(rows, tm)


@functools.partial(jax.jit, static_argnames=("n_out",))
def glioma_stage_forward(x, w_packed, b0_aug, n_out=2):
    """x: [B, n_features] float32. w_packed/b0_aug from prepare_packed_params."""
    B, n_in = x.shape
    x = x.astype(jnp.float32)

    # Only truly tiny batches get (cheap) row padding; everything else relies on
    # Pallas' masked edge blocks, so no padded copy of x is written to HBM.
    rows = max(B, _OUT_PAD)
    if rows != B:
        x = jnp.pad(x, ((0, rows - B), (0, 0)))

    tm, n_steps = _pick_tiling(rows)

    flops = 2 * rows * _LANE * _LANE * _N_LAYERS
    bytes_accessed = 4 * (rows * n_in + w_packed.size + b0_aug.size
                          + _OUT_PAD * rows)

    out_t = pl.pallas_call(
        glioma_mlp_kernel,
        out_shape=jax.ShapeDtypeStruct((_OUT_PAD, rows), jnp.float32),
        grid=(n_steps,),
        in_specs=[
            pl.BlockSpec((tm, n_in), lambda i: (i, 0)),
            # Weights / bias: constant index_map -> fetched once, VMEM-resident.
            pl.BlockSpec((_N_LAYERS, _LANE, _LANE), lambda i: (0, 0, 0)),
            pl.BlockSpec((1, _LANE), lambda i: (0, 0)),
        ],
        out_specs=pl.BlockSpec((_OUT_PAD, tm), lambda i: (0, i)),
        compiler_params=pltpu.CompilerParams(
            dimension_semantics=("parallel",),
            vmem_limit_bytes=32 * 1024 * 1024),
        cost_estimate=pl.CostEstimate(flops=flops, transcendentals=0,
                                      bytes_accessed=bytes_accessed),
    )(x, w_packed, b0_aug)

    # Tiny (n_out, B) slice + transpose outside the kernel.
    return out_t[:n_out, :B].T


def init_params(key, n_features=9, hidden1=100, hidden2=50, hidden3=30, output=2):
    """Deterministic init mimicking PyTorch Linear default: U(-1/sqrt(in), 1/sqrt(in))."""
    layer_dims = [("fc1", n_features, hidden1),
                  ("fc2", hidden1, hidden2),
                  ("fc3", hidden2, hidden3),
                  ("out", hidden3, output)]
    params = {}
    for name, din, dout in layer_dims:
        key, kw, kb = jax.random.split(key, 3)
        bound = 1.0 / jnp.sqrt(jnp.float32(din))
        w = jax.random.uniform(kw, (dout, din), jnp.float32, -bound, bound)
        b = jax.random.uniform(kb, (dout,), jnp.float32, -bound, bound)
        params[name] = (w, b)
    return params


def reference_forward(x, params):
    (w1, b1), (w2, b2), (w3, b3), (w4, b4) = (
        params["fc1"], params["fc2"], params["fc3"], params["out"])
    h = jnp.maximum(x @ w1.T + b1, 0.0)
    h = jnp.maximum(h @ w2.T + b2, 0.0)
    h = jnp.maximum(h @ w3.T + b3, 0.0)
    return h @ w4.T + b4


if __name__ == "__main__":
    key = jax.random.PRNGKey(0)
    key, kx = jax.random.split(key)

    batch, n_features = 2, 9
    x = jax.random.normal(kx, (batch, n_features), jnp.float32)
    params = init_params(key, n_features=n_features)

    # One-time weight packing / bias folding (outside the hot forward path).
    w_packed, b0_aug = jax.block_until_ready(prepare_packed_params(params))

    out = jax.block_until_ready(glioma_stage_forward(x, w_packed, b0_aug))
    ref = reference_forward(x, params)
    assert out.shape == (batch, 2), out.shape
    assert jnp.allclose(out, ref, atol=1e-5, rtol=1e-5), (out, ref)

    # Single big-tile path (grid of 1).
    key, kx2 = jax.random.split(key)
    x_mid = jax.random.normal(kx2, (1000, n_features), jnp.float32)
    out_mid = jax.block_until_ready(glioma_stage_forward(x_mid, w_packed, b0_aug))
    assert out_mid.shape == (1000, 2)
    assert jnp.allclose(out_mid, reference_forward(x_mid, params),
                        atol=1e-4, rtol=1e-4)

    # Multi-step batch grid with a ragged (masked) last tile.
    key, kx3 = jax.random.split(key)
    x_big = jax.random.normal(kx3, (5000, n_features), jnp.float32)
    out_big = jax.block_until_ready(glioma_stage_forward(x_big, w_packed, b0_aug))
    assert out_big.shape == (5000, 2)
    assert jnp.allclose(out_big, reference_forward(x_big, params),
                        atol=1e-4, rtol=1e-4)

    print("KERNEL_OK")
</pallas_src>

<mosaic_0001>
module attributes {stable_mosaic.version = 11 : i64} {
  func.func @glioma_mlp_kernel(%arg0: i32, %arg1: memref<8x9xf32, #tpu.memory_space<vmem>>, %arg2: memref<4x128x128xf32, #tpu.memory_space<vmem>>, %arg3: memref<1x128xf32, #tpu.memory_space<vmem>>, %arg4: memref<8x8xf32, #tpu.memory_space<vmem>>) attributes {dimension_semantics = [#tpu.dimension_semantics<parallel>], iteration_bounds = array<i64: 1>, scalar_prefetch = 0 : i64, scratch_operands = 0 : i64, tpu.core_type = #tpu.core_type<tc>, window_params = [{transform_indices = @transform_0, window_bounds = array<i64: 8, 9>}, {pipeline_mode = #tpu.pipeline_mode<synchronous>, transform_indices = @transform_1, window_bounds = array<i64: 4, 128, 128>}, {pipeline_mode = #tpu.pipeline_mode<synchronous>, transform_indices = @transform_2, window_bounds = array<i64: 1, 128>}, {transform_indices = @transform_3, window_bounds = array<i64: 8, 8>}]} {
    %c0 = arith.constant 0 : index
    %c0_0 = arith.constant 0 : index
    %0 = vector.load %arg1[%c0, %c0_0] : memref<8x9xf32, #tpu.memory_space<vmem>>, vector<8x9xf32>
    %c0_1 = arith.constant 0 : index
    %c0_2 = arith.constant 0 : index
    %c0_3 = arith.constant 0 : index
    %1 = vector.load %arg2[%c0_1, %c0_2, %c0_3] : memref<4x128x128xf32, #tpu.memory_space<vmem>>, vector<1x9x128xf32>
    %2 = vector.shape_cast %1 : vector<1x9x128xf32> to vector<9x128xf32>
    %cst = arith.constant dense<0.000000e+00> : vector<8x128xf32>
    %3 = tpu.matmul %0, %2, %cst {dimension_numbers = #tpu.dot_dimension_numbers<[1], [0], [0], [1], [0, 0, 1, 1], [], []>} : vector<8x9xf32>, vector<9x128xf32>, vector<8x128xf32> -> vector<8x128xf32>
    %c0_4 = arith.constant 0 : index
    %c0_5 = arith.constant 0 : index
    %4 = vector.load %arg3[%c0_4, %c0_5] : memref<1x128xf32, #tpu.memory_space<vmem>>, vector<1x128xf32>
    %5 = vector.broadcast %4 : vector<1x128xf32> to vector<8x128xf32>
    %6 = arith.addf %3, %5 : vector<8x128xf32>
    %cst_6 = arith.constant 0.000000e+00 : f32
    %7 = vector.broadcast %cst_6 : f32 to vector<8x128xf32>
    %8 = arith.maximumf %6, %7 : vector<8x128xf32>
    %c1 = arith.constant 1 : index
    %c0_7 = arith.constant 0 : index
    %c0_8 = arith.constant 0 : index
    %9 = vector.load %arg2[%c1, %c0_7, %c0_8] : memref<4x128x128xf32, #tpu.memory_space<vmem>>, vector<1x128x128xf32>
    %10 = vector.shape_cast %9 : vector<1x128x128xf32> to vector<128x128xf32>
    %cst_9 = arith.constant dense<0.000000e+00> : vector<8x128xf32>
    %11 = tpu.matmul %8, %10, %cst_9 {dimension_numbers = #tpu.dot_dimension_numbers<[1], [0], [0], [1], [0, 0, 1, 1], [], []>} : vector<8x128xf32>, vector<128x128xf32>, vector<8x128xf32> -> vector<8x128xf32>
    %cst_10 = arith.constant 0.000000e+00 : f32
    %12 = vector.broadcast %cst_10 : f32 to vector<8x128xf32>
    %13 = arith.maximumf %11, %12 : vector<8x128xf32>
    %c2 = arith.constant 2 : index
    %c0_11 = arith.constant 0 : index
    %c0_12 = arith.constant 0 : index
    %14 = vector.load %arg2[%c2, %c0_11, %c0_12] : memref<4x128x128xf32, #tpu.memory_space<vmem>>, vector<1x128x128xf32>
    %15 = vector.shape_cast %14 : vector<1x128x128xf32> to vector<128x128xf32>
    %cst_13 = arith.constant dense<0.000000e+00> : vector<8x128xf32>
    %16 = tpu.matmul %13, %15, %cst_13 {dimension_numbers = #tpu.dot_dimension_numbers<[1], [0], [0], [1], [0, 0, 1, 1], [], []>} : vector<8x128xf32>, vector<128x128xf32>, vector<8x128xf32> -> vector<8x128xf32>
    %cst_14 = arith.constant 0.000000e+00 : f32
    %17 = vector.broadcast %cst_14 : f32 to vector<8x128xf32>
    %18 = arith.maximumf %16, %17 : vector<8x128xf32>
    %c3 = arith.constant 3 : index
    %c0_15 = arith.constant 0 : index
    %c0_16 = arith.constant 0 : index
    %19 = vector.load %arg2[%c3, %c0_15, %c0_16] : memref<4x128x128xf32, #tpu.memory_space<vmem>>, vector<1x8x128xf32>
    %20 = vector.shape_cast %19 : vector<1x8x128xf32> to vector<8x128xf32>
    %cst_17 = arith.constant dense<0.000000e+00> : vector<8x8xf32>
    %21 = tpu.matmul %20, %18, %cst_17 {dimension_numbers = #tpu.dot_dimension_numbers<[1], [1], [0], [0], [0, 0, 1, 0], [], []>} : vector<8x128xf32>, vector<8x128xf32>, vector<8x8xf32> -> vector<8x8xf32>
    %c0_18 = arith.constant 0 : index
    %c0_19 = arith.constant 0 : index
    %22 = vector.load %arg4[%c0_18, %c0_19] : memref<8x8xf32, #tpu.memory_space<vmem>>, vector<8x8xf32>
    tpu.vector_store %arg4[%c0_18, %c0_19], %21 {strides = array<i32>} : memref<8x8xf32, #tpu.memory_space<vmem>>, vector<8x8xf32>,
    return
  }
  func.func @transform_0(%arg0: i32) -> (i32, i32) {
    %c0_i32 = arith.constant 0 : i32
    %c0_i32_0 = arith.constant 0 : i32
    return %arg0, %c0_i32 : i32, i32
  }
  func.func @transform_1(%arg0: i32) -> (i32, i32, i32) {
    %c0_i32 = arith.constant 0 : i32
    %c0_i32_0 = arith.constant 0 : i32
    %c0_i32_1 = arith.constant 0 : i32
    %c0_i32_2 = arith.constant 0 : i32
    return %c0_i32, %c0_i32_0, %c0_i32_1 : i32, i32, i32
  }
  func.func @transform_2(%arg0: i32) -> (i32, i32) {
    %c0_i32 = arith.constant 0 : i32
    %c0_i32_0 = arith.constant 0 : i32
    %c0_i32_1 = arith.constant 0 : i32
    return %c0_i32, %c0_i32_0 : i32, i32
  }
  func.func @transform_3(%arg0: i32) -> (i32, i32) {
    %c0_i32 = arith.constant 0 : i32
    %c0_i32_0 = arith.constant 0 : i32
    return %c0_i32, %arg0 : i32, i32
  }
}

</mosaic_0001>

<llo_original>
// kernel: glioma_stage_forward.1
$region0: #{glioma_stage_forward.1}
  #allocation0 [shape = 'u32[]', space=smem, size = 0x4, offset = 0x4, fixed_abs, tag = 'smem constant byte address 0x4 - core index']
  #allocation1 [shape = 'u32[144,128]{1,0:T(1,128)}', space=vmem, size = 0x12000, scoped, tag = 'internal scratch']
  %s0 = inlined_call_operand.vmem [shape: f32[8,9], index: 0, kind: input, shape index: {}]
  %s1 = inlined_call_operand.hbm [shape: f32[4,128,128], index: 1, kind: input, shape index: {}]
  %s2 = inlined_call_operand.vmem [shape: f32[1,128], index: 2, kind: input, shape index: {}]
  %s3 = inlined_call_operand.vmem [shape: f32[8,8], index: 3, kind: output, shape index: {}]
  %s4 = sld [smem:[#allocation0]]
  $region26: #{glioma_stage_forward.1} parent=0
    _
  %s6 = ssub.s32 1, %s4
  %s7 = scalar_select 0, %s6, %s4
  $region1: #{glioma_stage_forward.1} parent=0
    #allocation2 [shape = 'u8[262144]{0}', space=vmem, size = 0x40000, scoped, tag = 'input window, operand 1, single buffered']
    #allocation3 [shape = 's32[1]{0}', space=sflag, size = 0x4, scoped, tag = 'scoped memory for glioma_stage_forward.1']
    %8 = vsyncpa [#allocation3], 0
    // Predicated region
    $region2: #{glioma_stage_forward.1} parent=1 // pred_check
      _
    $region3: #{glioma_stage_forward.1} parent=1 // pred_check_branch
      %10 = sbr.rel (0) target = $region5
    $region4: #{glioma_stage_forward.1} parent=1 // pred_region
      _
    $region5: #{glioma_stage_forward.1} parent=1 // pred_fallthru
      _
    // Predicated region
    $region6: #{glioma_stage_forward.1} parent=1 // pred_check
      _
    $region7: #{glioma_stage_forward.1} parent=1 // pred_check_branch
      %12 = sbr.rel (0) target = $region9
    $region8: #{glioma_stage_forward.1} parent=1 // pred_region
      %s14 = ssub.s32 8192, 8192
      %15 = vsyncadd [#allocation3], %s14
      %s16 = sshll.u32 [#allocation2], 4
      %s17 = int_to_ptr.vmem [resolvable:$true] %s16
      %22 = dma.hbm_to_vmem [thread:$0]  %s1, 8192, %s17, [#allocation3], 128, 128, 8
    $region9: #{glioma_stage_forward.1} parent=1 // pred_fallthru
      _
    // Predicated region
    $region10: #{glioma_stage_forward.1} parent=1 // pred_check
      _
    $region11: #{glioma_stage_forward.1} parent=1 // pred_check_branch
      %24 = sbr.rel (0) target = $region13
    $region12: #{glioma_stage_forward.1} parent=1 // pred_region
      _
    $region13: #{glioma_stage_forward.1} parent=1 // pred_fallthru
      _
    // Predicated region
    $region14: #{glioma_stage_forward.1} parent=1 // pred_check
      _
    $region15: #{glioma_stage_forward.1} parent=1 // pred_check_branch
      %26 = sbr.rel (0) target = $region17
    $region16: #{glioma_stage_forward.1} parent=1 // pred_region
      %27 = dma.done [#allocation3], 8192
    $region17: #{glioma_stage_forward.1} parent=1 // pred_fallthru
      _
    %v28 = vld [vmem:[%s0] sm:$0xff]
    %v29 = vld [vmem:[#allocation2] sm:$0xff]
    %v30 = vld [vmem:[#allocation2 + $0x8] sm:$0x1]
    %v31 = vld [vmem:[%s2] sm:$0x1]
    %v33 = vlaneseq
    %v34 = vshrl.u32 %v33, 7
    %v35 = vsub.s32 0, %v34
    %v36 = vrot.slane %v31, %v35
    %vm38 = vcmask 72704
    %v40 = vsel %vm38, %v28, 0
    %vm42 = vcmask 1040384
    %v44 = vsel %vm42, %v30, 0
    %46 = vmatprep.subr.mxu0 0.0
    %47 = vmatpush1.msra.mxu0 0.0
    %48 = vmatprep.subr.mxu0 0.0
    %49 = vmatpush1.msra.mxu0 0.0
    %50 = vmatprep.subr.mxu0 0.0
    %51 = vmatpush1.msra.mxu0 0.0
    %52 = vmatprep.subr.mxu0 0.0
    %53 = vmatpush1.msra.mxu0 0.0
    %54 = vmatprep.subr.mxu0 0.0
    %55 = vmatpush1.msra.mxu0 0.0
    %56 = vmatprep.subr.mxu0 0.0
    %57 = vmatpush1.msra.mxu0 0.0
    %58 = vmatprep.subr.mxu0 0.0
    %59 = vmatpush1.msra.mxu0 0.0
    %60 = vmatprep.subr.mxu0 0.0
    %61 = vmatpush1.msra.mxu0 0.0
    %62 = vmatprep.subr.mxu0 0.0
    %63 = vmatpush1.msra.mxu0 0.0
    %64 = vmatprep.subr.mxu0 0.0
    %65 = vmatpush1.msra.mxu0 0.0
    %66 = vmatprep.subr.mxu0 0.0
    %67 = vmatpush1.msra.mxu0 0.0
    %68 = vmatprep.subr.mxu0 0.0
    %69 = vmatpush1.msra.mxu0 0.0
    %70 = vmatprep.subr.mxu0 0.0
    %71 = vmatpush1.msra.mxu0 0.0
    %72 = vmatprep.subr.mxu0 0.0
    %73 = vmatpush1.msra.mxu0 0.0
    %74 = vmatprep.subr.mxu0 0.0
    %75 = vmatpush1.msra.mxu0 %v44
    %76 = vmatprep.subr.mxu0 0.0
    %77 = vmatpush1.msra.mxu0 %v29
    %78 = vmatprep.subr.mxu0 0.0
    %79 = vmatpush2.msra.mxu0 0.0
    %80 = vmatprep.subr.mxu0 0.0
    %81 = vmatpush2.msra.mxu0 0.0
    %82 = vmatprep.subr.mxu0 0.0
    %83 = vmatpush2.msra.mxu0 0.0
    %84 = vmatprep.subr.mxu0 0.0
    %85 = vmatpush2.msra.mxu0 0.0
    %86 = vmatprep.subr.mxu0 0.0
    %87 = vmatpush2.msra.mxu0 0.0
    %88 = vmatprep.subr.mxu0 0.0
    %89 = vmatpush2.msra.mxu0 0.0
    %90 = vmatprep.subr.mxu0 0.0
    %91 = vmatpush2.msra.mxu0 0.0
    %92 = vmatprep.subr.mxu0 0.0
    %93 = vmatpush2.msra.mxu0 0.0
    %94 = vmatprep.subr.mxu0 0.0
    %95 = vmatpush2.msra.mxu0 0.0
    %96 = vmatprep.subr.mxu0 0.0
    %97 = vmatpush2.msra.mxu0 0.0
    %98 = vmatprep.subr.mxu0 0.0
    %99 = vmatpush2.msra.mxu0 0.0
    %100 = vmatprep.subr.mxu0 0.0
    %101 = vmatpush2.msra.mxu0 0.0
    %102 = vmatprep.subr.mxu0 0.0
    %103 = vmatpush2.msra.mxu0 0.0
    %104 = vmatprep.subr.mxu0 0.0
    %105 = vmatpush2.msra.mxu0 0.0
    %106 = vmatprep.subr.mxu0 0.0
    %107 = vmatpush2.msra.mxu0 0.0
    %108 = vmatprep.subr.mxu0 0.0
    %109 = vmatpush2.msra.mxu0 0.0
    %110 = vmatprep.mubr.f32.mxu0 0.0
    %111 = vmatmul.mubr.f32.gmra.mxu0 %v40
    %v112 = vpop.f32.mrf.mxu0
    %v113 = vadd.f32 %v36, %v112
    %v114 = vpop.f32.mrf.mxu0
    %115 = vdwg.mxu0
    %v116 = vmax.f32 %v113, 0.0
    %s117 = scalar_lea.vmem [#allocation2], 128
    %v118 = vld [vmem:[%s117] sm:$0xff]
    %v119 = vld [vmem:[%s117 + $0x8] sm:$0xff]
    %v120 = vld [vmem:[%s117 + $0x10] sm:$0xff]
    %v121 = vld [vmem:[%s117 + $0x18] sm:$0xff]
    %v122 = vld [vmem:[%s117 + $0x20] sm:$0xff]
    %v123 = vld [vmem:[%s117 + $0x28] sm:$0xff]
    %v124 = vld [vmem:[%s117 + $0x30] sm:$0xff]
    %v125 = vld [vmem:[%s117 + $0x38] sm:$0xff]
    %v126 = vld [vmem:[%s117 + $0x40] sm:$0xff]
    %v127 = vld [vmem:[%s117 + $0x48] sm:$0xff]
    %v128 = vld [vmem:[%s117 + $0x50] sm:$0xff]
    %v129 = vld [vmem:[%s117 + $0x58] sm:$0xff]
    %v130 = vld [vmem:[%s117 + $0x60] sm:$0xff]
    %v131 = vld [vmem:[%s117 + $0x68] sm:$0xff]
    %v132 = vld [vmem:[%s117 + $0x70] sm:$0xff]
    %v133 = vld [vmem:[%s117 + $0x78] sm:$0xff]
    %134 = vmatprep.subr.mxu0 0.0
    %135 = vmatpush1.msra.mxu0 %v133
    %136 = vmatprep.subr.mxu0 0.0
    %137 = vmatpush1.msra.mxu0 %v132
    %138 = vmatprep.subr.mxu0 0.0
    %139 = vmatpush1.msra.mxu0 %v131
    %140 = vmatprep.subr.mxu0 0.0
    %141 = vmatpush1.msra.mxu0 %v130
    %142 = vmatprep.subr.mxu0 0.0
    %143 = vmatpush1.msra.mxu0 %v129
    %144 = vmatprep.subr.mxu0 0.0
    %145 = vmatpush1.msra.mxu0 %v128
    %146 = vmatprep.subr.mxu0 0.0
    %147 = vmatpush1.msra.mxu0 %v127
    %148 = vmatprep.subr.mxu0 0.0
    %149 = vmatpush1.msra.mxu0 %v126
    %150 = vmatprep.subr.mxu0 0.0
    %151 = vmatpush1.msra.mxu0 %v125
    %152 = vmatprep.subr.mxu0 0.0
    %153 = vmatpush1.msra.mxu0 %v124
    %154 = vmatprep.subr.mxu0 0.0
    %155 = vmatpush1.msra.mxu0 %v123
    %156 = vmatprep.subr.mxu0 0.0
    %157 = vmatpush1.msra.mxu0 %v122
    %158 = vmatprep.subr.mxu0 0.0
    %159 = vmatpush1.msra.mxu0 %v121
    %160 = vmatprep.subr.mxu0 0.0
    %161 = vmatpush1.msra.mxu0 %v120
    %162 = vmatprep.subr.mxu0 0.0
    %163 = vmatpush1.msra.mxu0 %v119
    %164 = vmatprep.subr.mxu0 0.0
    %165 = vmatpush1.msra.mxu0 %v118
    %166 = vmatprep.subr.mxu0 0.0
    %167 = vmatpush2.msra.mxu0 0.0
    %168 = vmatprep.subr.mxu0 0.0
    %169 = vmatpush2.msra.mxu0 0.0
    %170 = vmatprep.subr.mxu0 0.0
    %171 = vmatpush2.msra.mxu0 0.0
    %172 = vmatprep.subr.mxu0 0.0
    %173 = vmatpush2.msra.mxu0 0.0
    %174 = vmatprep.subr.mxu0 0.0
    %175 = vmatpush2.msra.mxu0 0.0
    %176 = vmatprep.subr.mxu0 0.0
    %177 = vmatpush2.msra.mxu0 0.0
    %178 = vmatprep.subr.mxu0 0.0
    %179 = vmatpush2.msra.mxu0 0.0
    %180 = vmatprep.subr.mxu0 0.0
    %181 = vmatpush2.msra.mxu0 0.0
    %182 = vmatprep.subr.mxu0 0.0
    %183 = vmatpush2.msra.mxu0 0.0
    %184 = vmatprep.subr.mxu0 0.0
    %185 = vmatpush2.msra.mxu0 0.0
    %186 = vmatprep.subr.mxu0 0.0
    %187 = vmatpush2.msra.mxu0 0.0
    %188 = vmatprep.subr.mxu0 0.0
    %189 = vmatpush2.msra.mxu0 0.0
    %190 = vmatprep.subr.mxu0 0.0
    %191 = vmatpush2.msra.mxu0 0.0
    %192 = vmatprep.subr.mxu0 0.0
    %193 = vmatpush2.msra.mxu0 0.0
    %194 = vmatprep.subr.mxu0 0.0
    %195 = vmatpush2.msra.mxu0 0.0
    %196 = vmatprep.subr.mxu0 0.0
    %197 = vmatpush2.msra.mxu0 0.0
    %198 = vmatprep.mubr.f32.mxu0 0.0
    %199 = vmatmul.mubr.f32.gmra.mxu0 %v116
    %v200 = vpop.f32.mrf.mxu0
    %v201 = vadd.f32 0.0, %v200
    %v202 = vpop.f32.mrf.mxu0
    %203 = vdwg.mxu0
    %v204 = vmax.f32 %v201, 0.0
    %s205 = scalar_lea.vmem [#allocation2], 256
    %v206 = vld [vmem:[%s205] sm:$0xff]
    %v207 = vld [vmem:[%s205 + $0x8] sm:$0xff]
    %v208 = vld [vmem:[%s205 + $0x10] sm:$0xff]
    %v209 = vld [vmem:[%s205 + $0x18] sm:$0xff]
    %v210 = vld [vmem:[%s205 + $0x20] sm:$0xff]
    %v211 = vld [vmem:[%s205 + $0x28] sm:$0xff]
    %v212 = vld [vmem:[%s205 + $0x30] sm:$0xff]
    %v213 = vld [vmem:[%s205 + $0x38] sm:$0xff]
    %v214 = vld [vmem:[%s205 + $0x40] sm:$0xff]
    %v215 = vld [vmem:[%s205 + $0x48] sm:$0xff]
    %v216 = vld [vmem:[%s205 + $0x50] sm:$0xff]
    %v217 = vld [vmem:[%s205 + $0x58] sm:$0xff]
    %v218 = vld [vmem:[%s205 + $0x60] sm:$0xff]
    %v219 = vld [vmem:[%s205 + $0x68] sm:$0xff]
    %v220 = vld [vmem:[%s205 + $0x70] sm:$0xff]
    %v221 = vld [vmem:[%s205 + $0x78] sm:$0xff]
    %222 = vmatprep.subr.mxu0 0.0
    %223 = vmatpush1.msra.mxu0 %v221
    %224 = vmatprep.subr.mxu0 0.0
    %225 = vmatpush1.msra.mxu0 %v220
    %226 = vmatprep.subr.mxu0 0.0
    %227 = vmatpush1.msra.mxu0 %v219
    %228 = vmatprep.subr.mxu0 0.0
    %229 = vmatpush1.msra.mxu0 %v218
    %230 = vmatprep.subr.mxu0 0.0
    %231 = vmatpush1.msra.mxu0 %v217
    %232 = vmatprep.subr.mxu0 0.0
    %233 = vmatpush1.msra.mxu0 %v216
    %234 = vmatprep.subr.mxu0 0.0
    %235 = vmatpush1.msra.mxu0 %v215
    %236 = vmatprep.subr.mxu0 0.0
    %237 = vmatpush1.msra.mxu0 %v214
    %238 = vmatprep.subr.mxu0 0.0
    %239 = vmatpush1.msra.mxu0 %v213
    %240 = vmatprep.subr.mxu0 0.0
    %241 = vmatpush1.msra.mxu0 %v212
    %242 = vmatprep.subr.mxu0 0.0
    %243 = vmatpush1.msra.mxu0 %v211
    %244 = vmatprep.subr.mxu0 0.0
    %245 = vmatpush1.msra.mxu0 %v210
    %246 = vmatprep.subr.mxu0 0.0
    %247 = vmatpush1.msra.mxu0 %v209
    %248 = vmatprep.subr.mxu0 0.0
    %249 = vmatpush1.msra.mxu0 %v208
    %250 = vmatprep.subr.mxu0 0.0
    %251 = vmatpush1.msra.mxu0 %v207
    %252 = vmatprep.subr.mxu0 0.0
    %253 = vmatpush1.msra.mxu0 %v206
    %254 = vmatprep.subr.mxu0 0.0
    %255 = vmatpush2.msra.mxu0 0.0
    %256 = vmatprep.subr.mxu0 0.0
    %257 = vmatpush2.msra.mxu0 0.0
    %258 = vmatprep.subr.mxu0 0.0
    %259 = vmatpush2.msra.mxu0 0.0
    %260 = vmatprep.subr.mxu0 0.0
    %261 = vmatpush2.msra.mxu0 0.0
    %262 = vmatprep.subr.mxu0 0.0
    %263 = vmatpush2.msra.mxu0 0.0
    %264 = vmatprep.subr.mxu0 0.0
    %265 = vmatpush2.msra.mxu0 0.0
    %266 = vmatprep.subr.mxu0 0.0
    %267 = vmatpush2.msra.mxu0 0.0
    %268 = vmatprep.subr.mxu0 0.0
    %269 = vmatpush2.msra.mxu0 0.0
    %270 = vmatprep.subr.mxu0 0.0
    %271 = vmatpush2.msra.mxu0 0.0
    %272 = vmatprep.subr.mxu0 0.0
    %273 = vmatpush2.msra.mxu0 0.0
    %274 = vmatprep.subr.mxu0 0.0
    %275 = vmatpush2.msra.mxu0 0.0
    %276 = vmatprep.subr.mxu0 0.0
    %277 = vmatpush2.msra.mxu0 0.0
    %278 = vmatprep.subr.mxu0 0.0
    %279 = vmatpush2.msra.mxu0 0.0
    %280 = vmatprep.subr.mxu0 0.0
    %281 = vmatpush2.msra.mxu0 0.0
    %282 = vmatprep.subr.mxu0 0.0
    %283 = vmatpush2.msra.mxu0 0.0
    %284 = vmatprep.subr.mxu0 0.0
    %285 = vmatpush2.msra.mxu0 0.0
    %286 = vmatprep.mubr.f32.mxu0 0.0
    %287 = vmatmul.mubr.f32.gmra.mxu0 %v204
    %v288 = vpop.f32.mrf.mxu0
    %v289 = vadd.f32 0.0, %v288
    %v290 = vpop.f32.mrf.mxu0
    %291 = vdwg.mxu0
    %v292 = vmax.f32 %v289, 0.0
    %s293 = scalar_lea.vmem [#allocation2], 384
    %v294 = vld [vmem:[%s293] sm:$0xff]
    %295 = vmatprep.subr.mxu0 0.0
    %296 = vmatpush1.xpose.msra.mxu0 0.0
    %297 = vmatprep.subr.mxu0 0.0
    %298 = vmatpush1.xpose.msra.mxu0 0.0
    %299 = vmatprep.subr.mxu0 0.0
    %300 = vmatpush1.xpose.msra.mxu0 0.0
    %301 = vmatprep.subr.mxu0 0.0
    %302 = vmatpush1.xpose.msra.mxu0 0.0
    %303 = vmatprep.subr.mxu0 0.0
    %304 = vmatpush1.xpose.msra.mxu0 0.0
    %305 = vmatprep.subr.mxu0 0.0
    %306 = vmatpush1.xpose.msra.mxu0 0.0
    %307 = vmatprep.subr.mxu0 0.0
    %308 = vmatpush1.xpose.msra.mxu0 0.0
    %309 = vmatprep.subr.mxu0 0.0
    %310 = vmatpush1.xpose.msra.mxu0 0.0
    %311 = vmatprep.subr.mxu0 0.0
    %312 = vmatpush1.xpose.msra.mxu0 0.0
    %313 = vmatprep.subr.mxu0 0.0
    %314 = vmatpush1.xpose.msra.mxu0 0.0
    %315 = vmatprep.subr.mxu0 0.0
    %316 = vmatpush1.xpose.msra.mxu0 0.0
    %317 = vmatprep.subr.mxu0 0.0
    %318 = vmatpush1.xpose.msra.mxu0 0.0
    %319 = vmatprep.subr.mxu0 0.0
    %320 = vmatpush1.xpose.msra.mxu0 0.0
    %321 = vmatprep.subr.mxu0 0.0
    %322 = vmatpush1.xpose.msra.mxu0 0.0
    %323 = vmatprep.subr.mxu0 0.0
    %324 = vmatpush1.xpose.msra.mxu0 0.0
    %325 = vmatprep.subr.mxu0 0.0
    %326 = vmatpush1.xpose.msra.mxu0 %v292
    %327 = vmatprep.subr.mxu0 0.0
    %328 = vmatpush2.xpose.msra.mxu0 0.0
    %329 = vmatprep.subr.mxu0 0.0
    %330 = vmatpush2.xpose.msra.mxu0 0.0
    %331 = vmatprep.subr.mxu0 0.0
    %332 = vmatpush2.xpose.msra.mxu0 0.0
    %333 = vmatprep.subr.mxu0 0.0
    %334 = vmatpush2.xpose.msra.mxu0 0.0
    %335 = vmatprep.subr.mxu0 0.0
    %336 = vmatpush2.xpose.msra.mxu0 0.0
    %337 = vmatprep.subr.mxu0 0.0
    %338 = vmatpush2.xpose.msra.mxu0 0.0
    %339 = vmatprep.subr.mxu0 0.0
    %340 = vmatpush2.xpose.msra.mxu0 0.0
    %341 = vmatprep.subr.mxu0 0.0
    %342 = vmatpush2.xpose.msra.mxu0 0.0
    %343 = vmatprep.subr.mxu0 0.0
    %344 = vmatpush2.xpose.msra.mxu0 0.0
    %345 = vmatprep.subr.mxu0 0.0
    %346 = vmatpush2.xpose.msra.mxu0 0.0
    %347 = vmatprep.subr.mxu0 0.0
    %348 = vmatpush2.xpose.msra.mxu0 0.0
    %349 = vmatprep.subr.mxu0 0.0
    %350 = vmatpush2.xpose.msra.mxu0 0.0
    %351 = vmatprep.subr.mxu0 0.0
    %352 = vmatpush2.xpose.msra.mxu0 0.0
    %353 = vmatprep.subr.mxu0 0.0
    %354 = vmatpush2.xpose.msra.mxu0 0.0
    %355 = vmatprep.subr.mxu0 0.0
    %356 = vmatpush2.xpose.msra.mxu0 0.0
    %357 = vmatprep.subr.mxu0 0.0
    %358 = vmatpush2.xpose.msra.mxu0 0.0
    %359 = vmatprep.mubr.f32.mxu0 0.0
    %360 = vmatmul.mubr.f32.gmra.mxu0 %v294
    %v361 = vpop.f32.mrf.mxu0
    %v362 = vadd.f32 0.0, %v361
    %v363 = vpop.f32.mrf.mxu0
    %364 = vdwg.mxu0
    %vm365 = vcmask 64512
    %366 = vst.msk [vmem:[%s3] sm:$0xff] %vm365, %v362
    // Predicated region
    $region18: #{glioma_stage_forward.1} parent=1 // pred_check
      _
    $region19: #{glioma_stage_forward.1} parent=1 // pred_check_branch
      %368 = sbr.rel (0) target = $region21
    $region20: #{glioma_stage_forward.1} parent=1 // pred_region
      _
    $region21: #{glioma_stage_forward.1} parent=1 // pred_fallthru
      _
    // Predicated region
    $region22: #{glioma_stage_forward.1} parent=1 // pred_check
      _
    $region23: #{glioma_stage_forward.1} parent=1 // pred_check_branch
      %370 = sbr.rel (0) target = $region25
    $region24: #{glioma_stage_forward.1} parent=1 // pred_region
      _
    $region25: #{glioma_stage_forward.1} parent=1 // pred_fallthru
      _
    %371 = vsyncpa [#allocation3], 1

</llo_original>
